<compile_context>
chip_gen: v5e
topology: v5e:2x2
jax: 0.10.0
libtpu: 0.0.40
codegen_flags: <defaults>
</compile_context>

<pallas_src>
import functools

import jax
import jax.numpy as jnp
from jax import lax
from jax.experimental import pallas as pl
from jax.experimental.pallas import tpu as pltpu


LANE = 128  # lane width / chunk size used for in-kernel streaming


def se_kernel(x_ref, w1t_ref, w2t_ref, o_ref, *, half):
    # x_ref : (Bt, C, HW)    w1t_ref : (C, Cr)    w2t_ref : (Cr, C)
    bt, c, hw = x_ref.shape
    n_full, rem = divmod(hw, LANE)
    f32 = jnp.float32

    # Hoisted once (anti-pattern: re-broadcasting an iota per loop iteration).
    lane_idx = lax.broadcasted_iota(jnp.int32, (1, 1, LANE), 2)

    # ---------- Phase 1: pooled sums of top / bottom halves -------------------
    # Stream x_ref in 128-lane aligned chunks; split top/bottom with a masked
    # select (VPU) instead of unaligned lane slices.  Only two reductions per
    # chunk -- the "whole" pool is derived arithmetically below.
    def pool_body(j, carry):
        up_s, dn_s = carry
        start = pl.multiple_of(j * LANE, LANE)
        xc = x_ref[:, :, pl.ds(start, LANE)].astype(f32)        # (bt, c, 128)
        m = lane_idx < (half - start)                           # top-half mask
        up_s = up_s + jnp.sum(jnp.where(m, xc, 0.0), axis=2)
        dn_s = dn_s + jnp.sum(jnp.where(m, 0.0, xc), axis=2)
        return up_s, dn_s

    zeros = jnp.zeros((bt, c), f32)
    up_s, dn_s = lax.fori_loop(0, n_full, pool_body, (zeros, zeros),
                               unroll=(n_full <= 8))

    if rem:  # static tail when HW is not a multiple of 128 (start stays aligned)
        start = n_full * LANE
        xc = x_ref[:, :, start:start + rem].astype(f32)
        lane_t = lax.broadcasted_iota(jnp.int32, (1, 1, rem), 2)
        m = lane_t < (half - start)
        up_s = up_s + jnp.sum(jnp.where(m, xc, 0.0), axis=2)
        dn_s = dn_s + jnp.sum(jnp.where(m, 0.0, xc), axis=2)

    # y = mean(top) + mean(bottom) + mean(all); the third pool is a weighted
    # combination of the two partial sums (exact also when H is odd).
    y = (up_s * (1.0 / half)
         + dn_s * (1.0 / (hw - half))
         + (up_s + dn_s) * (1.0 / hw))                          # (bt, c)

    # ---------- Phase 2: batched FCs (weights pre-transposed in the wrapper) --
    h = jnp.maximum(jnp.dot(y, w1t_ref[...], preferred_element_type=f32), 0.0)
    s = jax.nn.sigmoid(jnp.dot(h, w2t_ref[...], preferred_element_type=f32))
    s_b = s[:, :, None]                                         # (bt, c, 1)

    # ---------- Phase 3: scale & store -----------------------------------------
    # Re-read x_ref chunk by chunk (never hold the full tile across the FCs) and
    # write directly to o_ref with 128-lane aligned, unmasked stores.
    def scale_body(j, carry):
        start = pl.multiple_of(j * LANE, LANE)
        xc = x_ref[:, :, pl.ds(start, LANE)].astype(f32)
        o_ref[:, :, pl.ds(start, LANE)] = (xc * s_b).astype(o_ref.dtype)
        return carry

    lax.fori_loop(0, n_full, scale_body, 0, unroll=(n_full <= 8))
    if rem:
        start = n_full * LANE
        xc = x_ref[:, :, start:start + rem].astype(f32)
        o_ref[:, :, start:start + rem] = (xc * s_b).astype(o_ref.dtype)


def _pick_block_batch(B, C, HW, itemsize, target_bytes=2 << 20, min_steps=4):
    """Pick batch elements per grid step: ~target_bytes per block, >=min_steps
    grid steps when possible, and a divisor of B (no remainder handling)."""
    per = C * HW * itemsize
    bt = max(1, min(B, target_bytes // per)) if per <= target_bytes else 1
    while bt > 1 and (B + bt - 1) // bt < min_steps:
        bt -= 1
    while B % bt != 0:
        bt -= 1
    return bt


def se_layer(x, w1, w2, *, block_batch=None):
    """x: (B, C, H, W).  w1: (C//r, C), w2: (C, C//r)  (PyTorch nn.Linear layout)."""
    B, C, H, W = x.shape
    assert H >= 2, "split-height SE pooling needs H >= 2"
    HW = H * W
    half = (H // 2) * W
    Cr, C_in = w1.shape
    assert C_in == C and w2.shape == (C, Cr)

    # One-time weight transpose outside the kernel -> lane-dense matmul outputs.
    w1t = jnp.asarray(w1).T  # (C, Cr)
    w2t = jnp.asarray(w2).T  # (Cr, C)

    bt = block_batch if block_batch is not None else _pick_block_batch(
        B, C, HW, x.dtype.itemsize)
    assert B % bt == 0, "block_batch must divide the batch size"
    grid = (B // bt,)

    # VMEM budget: double-buffered in + out blocks, plus weights and slack.
    block_bytes = bt * C * HW * x.dtype.itemsize
    vmem_est = 4 * block_bytes + (w1t.size + w2t.size) * w1t.dtype.itemsize + (1 << 20)
    vmem_limit = int(min(vmem_est, 48 << 20)) if vmem_est > (30 << 20) else None

    xf = x.reshape(B, C, HW)
    out = pl.pallas_call(
        functools.partial(se_kernel, half=half),
        out_shape=jax.ShapeDtypeStruct((B, C, HW), x.dtype),
        grid=grid,
        in_specs=[
            pl.BlockSpec((bt, C, HW), lambda b: (b, 0, 0)),
            pl.BlockSpec((C, Cr), lambda b: (0, 0)),
            pl.BlockSpec((Cr, C), lambda b: (0, 0)),
        ],
        out_specs=pl.BlockSpec((bt, C, HW), lambda b: (b, 0, 0)),
        compiler_params=pltpu.CompilerParams(
            dimension_semantics=("parallel",),
            vmem_limit_bytes=vmem_limit),
    )(xf, w1t, w2t)
    return out.reshape(B, C, H, W)


def se_layer_ref(x, w1, w2):
    """Pure-JAX reference mirroring the PyTorch SELayer forward."""
    B, C, H, W = x.shape
    x1 = x[:, :, : H // 2, :]
    x2 = x[:, :, H // 2:, :]
    up = x1.mean(axis=(2, 3))
    down = x2.mean(axis=(2, 3))
    whole = x.mean(axis=(2, 3))
    y = up + down + whole                        # (B, C)
    y = jnp.maximum(y @ w1.T, 0.0)               # Linear(C, C//r, bias=False) + ReLU
    y = jax.nn.sigmoid(y @ w2.T)                 # Linear(C//r, C, bias=False) + Sigmoid
    return x * y[:, :, None, None]


if __name__ == "__main__":
    # channel=64, reduction=16 -> hidden=4 (matches SEResNet conv1 width); 16x16 spatial.
    B, C, H, W = 8, 64, 16, 16
    reduction = 16
    Cr = C // reduction

    key = jax.random.PRNGKey(0)
    kx, k1, k2 = jax.random.split(key, 3)
    x = jax.random.normal(kx, (B, C, H, W), dtype=jnp.float32)
    # PyTorch nn.Linear layout: (out_features, in_features)
    w1 = 0.1 * jax.random.normal(k1, (Cr, C), dtype=jnp.float32)
    w2 = 0.1 * jax.random.normal(k2, (C, Cr), dtype=jnp.float32)

    out = jax.block_until_ready(se_layer(x, w1, w2))
    ref = se_layer_ref(x, w1, w2)

    assert out.shape == (B, C, H, W)
    assert jnp.allclose(out, ref, atol=1e-5, rtol=1e-5), float(
        jnp.max(jnp.abs(out - ref)))

    print("KERNEL_OK")
</pallas_src>

<mosaic_0001>
module attributes {stable_mosaic.version = 11 : i64} {
  func.func @se_kernel(%arg0: i32, %arg1: memref<2x64x256xf32, #tpu.memory_space<vmem>>, %arg2: memref<64x4xf32, #tpu.memory_space<vmem>>, %arg3: memref<4x64xf32, #tpu.memory_space<vmem>>, %arg4: memref<2x64x256xf32, #tpu.memory_space<vmem>>) attributes {dimension_semantics = [#tpu.dimension_semantics<parallel>], iteration_bounds = array<i64: 4>, scalar_prefetch = 0 : i64, scratch_operands = 0 : i64, tpu.core_type = #tpu.core_type<tc>, window_params = [{transform_indices = @transform_0, window_bounds = array<i64: 2, 64, 256>}, {pipeline_mode = #tpu.pipeline_mode<synchronous>, transform_indices = @transform_1, window_bounds = array<i64: 64, 4>}, {pipeline_mode = #tpu.pipeline_mode<synchronous>, transform_indices = @transform_2, window_bounds = array<i64: 4, 64>}, {transform_indices = @transform_3, window_bounds = array<i64: 2, 64, 256>}]} {
    %0 = tpu.iota {dimensions = array<i32: 2>} : vector<1x1x128xi32>
    %cst = arith.constant 0.000000e+00 : f32
    %1 = vector.broadcast %cst : f32 to vector<2x64xf32>
    %c0_i32 = arith.constant 0 : i32
    %c128_i32 = arith.constant 128 : i32
    %2 = arith.muli %c0_i32, %c128_i32 : i32
    %3 = tpu.assume_multiple %2, 128 : i32
    %c0 = arith.constant 0 : index
    %c0_0 = arith.constant 0 : index
    %4 = arith.index_cast %3 : i32 to index
    %5 = vector.load %arg1[%c0, %c0_0, %4] : memref<2x64x256xf32, #tpu.memory_space<vmem>>, vector<2x64x128xf32>
    %c128_i32_1 = arith.constant 128 : i32
    %6 = arith.subi %c128_i32_1, %3 : i32
    %7 = vector.broadcast %6 : i32 to vector<1x1x128xi32>
    %8 = arith.cmpi slt, %0, %7 : vector<1x1x128xi32>
    %cst_2 = arith.constant 0.000000e+00 : f32
    %9 = vector.shape_cast %8 : vector<1x1x128xi1> to vector<1x1x128xi1>
    %10 = vector.broadcast %9 : vector<1x1x128xi1> to vector<2x64x128xi1>
    %11 = vector.broadcast %cst_2 : f32 to vector<2x64x128xf32>
    %12 = arith.select %10, %5, %11 : vector<2x64x128xi1>, vector<2x64x128xf32>
    %cst_3 = arith.constant dense<0.000000e+00> : vector<2x64xf32>
    %13 = vector.multi_reduction <add>, %12, %cst_3 [2] : vector<2x64x128xf32> to vector<2x64xf32>
    %14 = arith.addf %1, %13 : vector<2x64xf32>
    %cst_4 = arith.constant 0.000000e+00 : f32
    %15 = vector.shape_cast %8 : vector<1x1x128xi1> to vector<1x1x128xi1>
    %16 = vector.broadcast %15 : vector<1x1x128xi1> to vector<2x64x128xi1>
    %17 = vector.broadcast %cst_4 : f32 to vector<2x64x128xf32>
    %18 = arith.select %16, %17, %5 : vector<2x64x128xi1>, vector<2x64x128xf32>
    %cst_5 = arith.constant dense<0.000000e+00> : vector<2x64xf32>
    %19 = vector.multi_reduction <add>, %18, %cst_5 [2] : vector<2x64x128xf32> to vector<2x64xf32>
    %20 = arith.addf %1, %19 : vector<2x64xf32>
    %c1_i32 = arith.constant 1 : i32
    %c128_i32_6 = arith.constant 128 : i32
    %21 = arith.muli %c1_i32, %c128_i32_6 : i32
    %22 = tpu.assume_multiple %21, 128 : i32
    %c0_7 = arith.constant 0 : index
    %c0_8 = arith.constant 0 : index
    %23 = arith.index_cast %22 : i32 to index
    %24 = vector.load %arg1[%c0_7, %c0_8, %23] : memref<2x64x256xf32, #tpu.memory_space<vmem>>, vector<2x64x128xf32>
    %c128_i32_9 = arith.constant 128 : i32
    %25 = arith.subi %c128_i32_9, %22 : i32
    %26 = vector.broadcast %25 : i32 to vector<1x1x128xi32>
    %27 = arith.cmpi slt, %0, %26 : vector<1x1x128xi32>
    %cst_10 = arith.constant 0.000000e+00 : f32
    %28 = vector.shape_cast %27 : vector<1x1x128xi1> to vector<1x1x128xi1>
    %29 = vector.broadcast %28 : vector<1x1x128xi1> to vector<2x64x128xi1>
    %30 = vector.broadcast %cst_10 : f32 to vector<2x64x128xf32>
    %31 = arith.select %29, %24, %30 : vector<2x64x128xi1>, vector<2x64x128xf32>
    %cst_11 = arith.constant dense<0.000000e+00> : vector<2x64xf32>
    %32 = vector.multi_reduction <add>, %31, %cst_11 [2] : vector<2x64x128xf32> to vector<2x64xf32>
    %33 = arith.addf %14, %32 : vector<2x64xf32>
    %cst_12 = arith.constant 0.000000e+00 : f32
    %34 = vector.shape_cast %27 : vector<1x1x128xi1> to vector<1x1x128xi1>
    %35 = vector.broadcast %34 : vector<1x1x128xi1> to vector<2x64x128xi1>
    %36 = vector.broadcast %cst_12 : f32 to vector<2x64x128xf32>
    %37 = arith.select %35, %36, %24 : vector<2x64x128xi1>, vector<2x64x128xf32>
    %cst_13 = arith.constant dense<0.000000e+00> : vector<2x64xf32>
    %38 = vector.multi_reduction <add>, %37, %cst_13 [2] : vector<2x64x128xf32> to vector<2x64xf32>
    %39 = arith.addf %20, %38 : vector<2x64xf32>
    %c2_i32 = arith.constant 2 : i32
    %cst_14 = arith.constant 7.812500e-03 : f32
    %40 = vector.broadcast %cst_14 : f32 to vector<2x64xf32>
    %41 = arith.mulf %33, %40 : vector<2x64xf32>
    %cst_15 = arith.constant 7.812500e-03 : f32
    %42 = vector.broadcast %cst_15 : f32 to vector<2x64xf32>
    %43 = arith.mulf %39, %42 : vector<2x64xf32>
    %44 = arith.addf %41, %43 : vector<2x64xf32>
    %45 = arith.addf %33, %39 : vector<2x64xf32>
    %cst_16 = arith.constant 3.906250e-03 : f32
    %46 = vector.broadcast %cst_16 : f32 to vector<2x64xf32>
    %47 = arith.mulf %45, %46 : vector<2x64xf32>
    %48 = arith.addf %44, %47 : vector<2x64xf32>
    %c0_17 = arith.constant 0 : index
    %c0_18 = arith.constant 0 : index
    %49 = vector.load %arg2[%c0_17, %c0_18] : memref<64x4xf32, #tpu.memory_space<vmem>>, vector<64x4xf32>
    %cst_19 = arith.constant dense<0.000000e+00> : vector<2x4xf32>
    %50 = tpu.matmul %48, %49, %cst_19 {dimension_numbers = #tpu.dot_dimension_numbers<[1], [0], [0], [1], [0, 0, 1, 1], [], []>} : vector<2x64xf32>, vector<64x4xf32>, vector<2x4xf32> -> vector<2x4xf32>
    %cst_20 = arith.constant 0.000000e+00 : f32
    %51 = vector.broadcast %cst_20 : f32 to vector<2x4xf32>
    %52 = arith.maximumf %50, %51 : vector<2x4xf32>
    %c0_21 = arith.constant 0 : index
    %c0_22 = arith.constant 0 : index
    %53 = vector.load %arg3[%c0_21, %c0_22] : memref<4x64xf32, #tpu.memory_space<vmem>>, vector<4x64xf32>
    %cst_23 = arith.constant dense<0.000000e+00> : vector<2x64xf32>
    %54 = tpu.matmul %52, %53, %cst_23 {dimension_numbers = #tpu.dot_dimension_numbers<[1], [0], [0], [1], [0, 0, 1, 1], [], []>} : vector<2x4xf32>, vector<4x64xf32>, vector<2x64xf32> -> vector<2x64xf32>
    %55 = arith.negf %54 : vector<2x64xf32>
    %56 = math.exp %55 : vector<2x64xf32>
    %cst_24 = arith.constant 1.000000e+00 : f32
    %57 = vector.broadcast %cst_24 : f32 to vector<2x64xf32>
    %58 = arith.addf %57, %56 : vector<2x64xf32>
    %59 = arith.divf %57, %58 : vector<2x64xf32>
    %60 = vector.shape_cast %59 : vector<2x64xf32> to vector<2x64x1xf32>
    %c0_i32_25 = arith.constant 0 : i32
    %c128_i32_26 = arith.constant 128 : i32
    %61 = arith.muli %c0_i32_25, %c128_i32_26 : i32
    %62 = tpu.assume_multiple %61, 128 : i32
    %c0_27 = arith.constant 0 : index
    %c0_28 = arith.constant 0 : index
    %63 = arith.index_cast %62 : i32 to index
    %64 = vector.load %arg1[%c0_27, %c0_28, %63] : memref<2x64x256xf32, #tpu.memory_space<vmem>>, vector<2x64x128xf32>
    %65 = vector.broadcast %60 : vector<2x64x1xf32> to vector<2x64x128xf32>
    %66 = arith.mulf %64, %65 : vector<2x64x128xf32>
    %c0_29 = arith.constant 0 : index
    %c0_30 = arith.constant 0 : index
    %67 = arith.index_cast %62 : i32 to index
    %68 = vector.load %arg4[%c0_29, %c0_30, %67] : memref<2x64x256xf32, #tpu.memory_space<vmem>>, vector<2x64x128xf32>
    tpu.vector_store %arg4[%c0_29, %c0_30, %67], %66 {strides = array<i32>} : memref<2x64x256xf32, #tpu.memory_space<vmem>>, vector<2x64x128xf32>,
    %c1_i32_31 = arith.constant 1 : i32
    %c128_i32_32 = arith.constant 128 : i32
    %69 = arith.muli %c1_i32_31, %c128_i32_32 : i32
    %70 = tpu.assume_multiple %69, 128 : i32
    %c0_33 = arith.constant 0 : index
    %c0_34 = arith.constant 0 : index
    %71 = arith.index_cast %70 : i32 to index
    %72 = vector.load %arg1[%c0_33, %c0_34, %71] : memref<2x64x256xf32, #tpu.memory_space<vmem>>, vector<2x64x128xf32>
    %73 = vector.broadcast %60 : vector<2x64x1xf32> to vector<2x64x128xf32>
    %74 = arith.mulf %72, %73 : vector<2x64x128xf32>
    %c0_35 = arith.constant 0 : index
    %c0_36 = arith.constant 0 : index
    %75 = arith.index_cast %70 : i32 to index
    %76 = vector.load %arg4[%c0_35, %c0_36, %75] : memref<2x64x256xf32, #tpu.memory_space<vmem>>, vector<2x64x128xf32>
    tpu.vector_store %arg4[%c0_35, %c0_36, %75], %74 {strides = array<i32>} : memref<2x64x256xf32, #tpu.memory_space<vmem>>, vector<2x64x128xf32>,
    %c2_i32_37 = arith.constant 2 : i32
    return
  }
  func.func @transform_0(%arg0: i32) -> (i32, i32, i32) {
    %c0_i32 = arith.constant 0 : i32
    %c0_i32_0 = arith.constant 0 : i32
    %c0_i32_1 = arith.constant 0 : i32
    return %arg0, %c0_i32, %c0_i32_0 : i32, i32, i32
  }
  func.func @transform_1(%arg0: i32) -> (i32, i32) {
    %c0_i32 = arith.constant 0 : i32
    %c0_i32_0 = arith.constant 0 : i32
    %c0_i32_1 = arith.constant 0 : i32
    return %c0_i32, %c0_i32_0 : i32, i32
  }
  func.func @transform_2(%arg0: i32) -> (i32, i32) {
    %c0_i32 = arith.constant 0 : i32
    %c0_i32_0 = arith.constant 0 : i32
    %c0_i32_1 = arith.constant 0 : i32
    return %c0_i32, %c0_i32_0 : i32, i32
  }
  func.func @transform_3(%arg0: i32) -> (i32, i32, i32) {
    %c0_i32 = arith.constant 0 : i32
    %c0_i32_0 = arith.constant 0 : i32
    %c0_i32_1 = arith.constant 0 : i32
    return %arg0, %c0_i32, %c0_i32_0 : i32, i32, i32
  }
}

</mosaic_0001>

<llo_original>
// kernel: tpu_custom_call.1
$region0: #{tpu_custom_call.1}
  #allocation0 [shape = 'u32[]', space=smem, size = 0x4, offset = 0x4, fixed_abs, tag = 'smem constant byte address 0x4 - core index']
  #allocation1 [shape = 'u32[72,128]{1,0:T(1,128)}', space=vmem, size = 0x9000, scoped, tag = 'internal scratch']
  %s0 = inlined_call_operand.hbm [shape: f32[8,64,256], index: 0, kind: input, shape index: {}]
  %s1 = inlined_call_operand.vmem [shape: f32[64,4], index: 1, kind: input, shape index: {}]
  %s2 = inlined_call_operand.vmem [shape: f32[4,64], index: 2, kind: input, shape index: {}]
  %s3 = inlined_call_operand.hbm [shape: f32[8,64,256], index: 3, kind: output, shape index: {}]
  %s4 = sld [smem:[#allocation0]]
  $region49: #{tpu_custom_call.1} parent=0
    _
  %s6 = ssub.s32 1, %s4
  %s7 = scalar_select 0, %s6, %s4
  $region1: #{tpu_custom_call.1} parent=0
    #allocation2 [shape = 'u8[262144]{0}', space=vmem, size = 0x40000, scoped, tag = 'input window, operand 0']
    #allocation3 [shape = 's32[2]{0}', space=sflag, size = 0x8, scoped, tag = 'scoped memory for tpu_custom_call.1']
    #allocation4 [shape = 's32[2]{0}', space=sflag, size = 0x8, scoped, tag = 'scoped memory for tpu_custom_call.1']
    #allocation5 [shape = 'u8[262144]{0}', space=vmem, size = 0x40000, scoped, tag = 'output window, operand 0']
    %8 = vsyncpa [#allocation3], 0
    %s9 = scalar_lea.sflag [#allocation3], 1
    %10 = vsyncpa %s9, 0
    %11 = vsyncpa [#allocation4], 0
    %s12 = scalar_lea.sflag [#allocation4], 1
    %13 = vsyncpa %s12, 0
    loop: start=0, step=1, limit=6
    $region2: #{tpu_custom_call.1} parent=1 // loop_pre_header
      _
    $region3: #{tpu_custom_call.1} parent=1 // loop_header
      %s15 = sphi 0, %s19
      %p16 = scmp.ge.s32.totalorder %s15, 6
      %s25 = sphi 0, %s27
      %s28 = sphi 0, %s25
      %s29 = sphi 0, %s28
      %s45 = sphi 0, %s29
      %s49 = sphi 0, %s49
      %s51 = sphi 0, %s49
      %s52 = sphi 0, %s51
      %s66 = sphi 0, %s52
      %s70 = sphi 0, %s70
      %s72 = sphi 0, %s70
      %s73 = sphi 0, %s72
      %s87 = sphi 0, %s73
      %s93 = sphi 0, %s95
      %s96 = sphi 0, %s93
      %s97 = sphi 0, %s96
      %s113 = sphi 0, %s97
    $region4: #{tpu_custom_call.1} parent=1 // loop_header_branch
      %18 = sbr.rel (%p16) target = $region8
    $region5: #{tpu_custom_call.1} parent=1 // loop_body
      %s20 = ssub.s32 %s15, 1
      %s21 = ssub.s32 %s15, 2
      %s22 = sadd.s32 %s15, 1
      %s23 = ssub.s32 %s15, %s22
      %p24 = scmp.eq.s32.totalorder %s23, 0
      %s26 = sadd.s32 %s25, 1
      %s27 = scalar_select %p24, %s25, %s26
      %p30 = pneg %p24
      %p31 = scmp.eq.s32.totalorder %s15, 3
      %p32 = por %p30, %p31
      %p33 = scmp.ne.s32.totalorder %s25, %s28
      %p34 = scmp.eq.s32.totalorder %s15, 0
      %p35 = por %p33, %p34
      %p36 = scmp.ne.s32.totalorder %s25, %s28
      %p37 = scmp.eq.s32.totalorder %s20, 3
      %p38 = por %p36, %p37
      %p39 = scmp.ne.s32.totalorder %s28, %s29
      %p40 = scmp.eq.s32.totalorder %s20, 0
      %p41 = por %p39, %p40
      %p42 = scmp.ne.s32.totalorder %s28, %s29
      %p43 = scmp.eq.s32.totalorder %s21, 3
      %p44 = por %p42, %p43
      %p46 = scmp.ne.s32.totalorder %s29, %s45
      %p47 = scmp.eq.s32.totalorder %s21, 0
      %p48 = por %p46, %p47
      %s50 = sadd.s32 %s49, 1
      %p53 = scmp.eq.s32.totalorder %s15, 3
      %p54 = scmp.ne.s32.totalorder %s49, %s51
      %p55 = scmp.eq.s32.totalorder %s15, 0
      %p56 = por %p54, %p55
      %p57 = scmp.ne.s32.totalorder %s49, %s51
      %p58 = scmp.eq.s32.totalorder %s20, 3
      %p59 = por %p57, %p58
      %p60 = scmp.ne.s32.totalorder %s51, %s52
      %p61 = scmp.eq.s32.totalorder %s20, 0
      %p62 = por %p60, %p61
      %p63 = scmp.ne.s32.totalorder %s51, %s52
      %p64 = scmp.eq.s32.totalorder %s21, 3
      %p65 = por %p63, %p64
      %p67 = scmp.ne.s32.totalorder %s52, %s66
      %p68 = scmp.eq.s32.totalorder %s21, 0
      %p69 = por %p67, %p68
      %s71 = sadd.s32 %s70, 1
      %p74 = scmp.eq.s32.totalorder %s15, 3
      %p75 = scmp.ne.s32.totalorder %s70, %s72
      %p76 = scmp.eq.s32.totalorder %s15, 0
      %p77 = por %p75, %p76
      %p78 = scmp.ne.s32.totalorder %s70, %s72
      %p79 = scmp.eq.s32.totalorder %s20, 3
      %p80 = por %p78, %p79
      %p81 = scmp.ne.s32.totalorder %s72, %s73
      %p82 = scmp.eq.s32.totalorder %s20, 0
      %p83 = por %p81, %p82
      %p84 = scmp.ne.s32.totalorder %s72, %s73
      %p85 = scmp.eq.s32.totalorder %s21, 3
      %p86 = por %p84, %p85
      %p88 = scmp.ne.s32.totalorder %s73, %s87
      %p89 = scmp.eq.s32.totalorder %s21, 0
      %p90 = por %p88, %p89
      %s91 = ssub.s32 %s15, %s22
      %p92 = scmp.eq.s32.totalorder %s91, 0
      %s94 = sadd.s32 %s93, 1
      %s95 = scalar_select %p92, %s93, %s94
      %p98 = pneg %p92
      %p99 = scmp.eq.s32.totalorder %s15, 3
      %p100 = por %p98, %p99
      %p101 = scmp.ne.s32.totalorder %s93, %s96
      %p102 = scmp.eq.s32.totalorder %s15, 0
      %p103 = por %p101, %p102
      %p104 = scmp.ne.s32.totalorder %s93, %s96
      %p105 = scmp.eq.s32.totalorder %s20, 3
      %p106 = por %p104, %p105
      %p107 = scmp.ne.s32.totalorder %s96, %s97
      %p108 = scmp.eq.s32.totalorder %s20, 0
      %p109 = por %p107, %p108
      %p110 = scmp.ne.s32.totalorder %s96, %s97
      %p111 = scmp.eq.s32.totalorder %s21, 3
      %p112 = por %p110, %p111
      %p114 = scmp.ne.s32.totalorder %s97, %s113
      %p115 = scmp.eq.s32.totalorder %s21, 0
      %p116 = por %p114, %p115
      %p117 = scmp.le.s32.totalorder 1, %s15
      %p118 = scmp.lt.s32.totalorder %s15, 5
      %p119 = pnand %p117, %p118
      %p120 = pneg %p119
      // Predicated region
      $region9: #{tpu_custom_call.1} parent=5 // pred_check
        _
      $region10: #{tpu_custom_call.1} parent=5 // pred_check_branch
        %122 = sbr.rel (%p119) target = $region12
      $region11: #{tpu_custom_call.1} parent=5 // pred_region
        %s123 = ssub.s32 %s15, 1
        // Predicated region
        $region13: #{tpu_custom_call.1} parent=11 // pred_check
          %p124 = pneg %p62
        $region14: #{tpu_custom_call.1} parent=11 // pred_check_branch
          %126 = sbr.rel (%p124) target = $region16
        $region15: #{tpu_custom_call.1} parent=11 // pred_region
          _
        $region16: #{tpu_custom_call.1} parent=11 // pred_fallthru
          _
        // Predicated region
        $region17: #{tpu_custom_call.1} parent=11 // pred_check
          %p127 = pneg %p83
        $region18: #{tpu_custom_call.1} parent=11 // pred_check_branch
          %129 = sbr.rel (%p127) target = $region20
        $region19: #{tpu_custom_call.1} parent=11 // pred_region
          _
        $region20: #{tpu_custom_call.1} parent=11 // pred_fallthru
          _
      $region12: #{tpu_custom_call.1} parent=5 // pred_fallthru
        _
      %p130 = scmp.lt.s32.totalorder %s15, 4
      // Predicated region
      $region21: #{tpu_custom_call.1} parent=5 // pred_check
        %p131 = pneg %p130
      $region22: #{tpu_custom_call.1} parent=5 // pred_check_branch
        %133 = sbr.rel (%p131) target = $region24
      $region23: #{tpu_custom_call.1} parent=5 // pred_region
        // Predicated region
        $region25: #{tpu_custom_call.1} parent=23 // pred_check
          %p134 = pneg %p35
        $region26: #{tpu_custom_call.1} parent=23 // pred_check_branch
          %136 = sbr.rel (%p134) target = $region28
        $region27: #{tpu_custom_call.1} parent=23 // pred_region
          %s137 = sand.u32 %s25, 1
          %s138 = scalar_lea.sflag [#allocation3], %s137
          %s139 = sand.u32 %s25, 1
          %s140 = smul.addr %s139, 256
          %s141 = scalar_lea.vmem [#allocation2], %s140
          %s142 = smul.u32 2, %s15
          %144 = vsyncadd %s138, 0
          %s145 = smul.addr %s142, 16
          %s146 = smul.addr %s145, 8
          %s147 = scalar_lea.hbm %s0, %s146
          %s148 = sshll.u32 %s147, 4
          %s149 = int_to_ptr.hbm [resolvable:$true] %s148
          %s150 = sshll.u32 %s141, 4
          %s151 = int_to_ptr.vmem [resolvable:$true] %s150
          %156 = dma.hbm_to_vmem [thread:$0]  %s149, 4096, %s151, %s138, 256, 256, 16
        $region28: #{tpu_custom_call.1} parent=23 // pred_fallthru
          _
      $region24: #{tpu_custom_call.1} parent=5 // pred_fallthru
        _
      %p157 = scmp.le.s32.totalorder 1, %s15
      %p158 = scmp.lt.s32.totalorder %s15, 5
      %p159 = pnand %p157, %p158
      %p160 = pneg %p159
      // Predicated region
      $region29: #{tpu_custom_call.1} parent=5 // pred_check
        _
      $region30: #{tpu_custom_call.1} parent=5 // pred_check_branch
        %162 = sbr.rel (%p159) target = $region32
      $region31: #{tpu_custom_call.1} parent=5 // pred_region
        %s163 = ssub.s32 %s15, 1
        %s164 = sand.u32 %s28, 1
        %s165 = scalar_lea.sflag [#allocation3], %s164
        %s166 = sand.u32 %s28, 1
        %s167 = smul.addr %s166, 256
        %s168 = scalar_lea.vmem [#allocation2], %s167
        // Predicated region
        $region33: #{tpu_custom_call.1} parent=31 // pred_check
          %p169 = pneg %p41
        $region34: #{tpu_custom_call.1} parent=31 // pred_check_branch
          %171 = sbr.rel (%p169) target = $region36
        $region35: #{tpu_custom_call.1} parent=31 // pred_region
          %173 = dma.done %s165, 4096
        $region36: #{tpu_custom_call.1} parent=31 // pred_fallthru
          _
        %s174 = sand.u32 %s28, 1
        %s175 = scalar_lea.sflag [#allocation3], %s174
        %s176 = sand.u32 %s28, 1
        %s177 = smul.addr %s176, 256
        %s178 = scalar_lea.vmem [#allocation2], %s177
        %p179 = pneg %p41
        %p180 = pneg %p38
        %p181 = pneg %p62
        %p182 = pneg %p59
        %p183 = pneg %p83
        %p184 = pneg %p80
        %p185 = pneg %p109
        %p186 = pneg %p106
        %s187 = sand.u32 %s96, 1
        %s188 = scalar_lea.sflag [#allocation4], %s187
        %s189 = sand.u32 %s96, 1
        %s190 = smul.addr %s189, 256
        %s191 = scalar_lea.vmem [#allocation5], %s190
        %s192 = smul.u32 2, %s20
        %s193 = smul.u32 2, %s20
        %v194 = vlaneseq
        %v195 = vand.u32 %v194, 127
        %v196 = vld [vmem:[%s168] sm:$0xff]
        %v197 = vld [vmem:[%s168 + $0x10] sm:$0xff]
        %v198 = vld [vmem:[%s168 + $0x20] sm:$0xff]
        %v199 = vld [vmem:[%s168 + $0x30] sm:$0xff]
        %v200 = vld [vmem:[%s168 + $0x40] sm:$0xff]
        %v201 = vld [vmem:[%s168 + $0x50] sm:$0xff]
        %v202 = vld [vmem:[%s168 + $0x60] sm:$0xff]
        %v203 = vld [vmem:[%s168 + $0x70] sm:$0xff]
        %v204 = vld [vmem:[%s168 + $0x80] sm:$0xff]
        %v205 = vld [vmem:[%s168 + $0x90] sm:$0xff]
        %v206 = vld [vmem:[%s168 + $0xa0] sm:$0xff]
        %v207 = vld [vmem:[%s168 + $0xb0] sm:$0xff]
        %v208 = vld [vmem:[%s168 + $0xc0] sm:$0xff]
        %v209 = vld [vmem:[%s168 + $0xd0] sm:$0xff]
        %v210 = vld [vmem:[%s168 + $0xe0] sm:$0xff]
        %v211 = vld [vmem:[%s168 + $0xf0] sm:$0xff]
        %s212 = ssub.s32 128, 0
        %v213 = vstv %s212
        %vm214 = vcmp.lt.s32.totalorder %v195, %v213
        %v215 = vsel %vm214, 1, 0
        %vm216 = vcmp.eq.s32.totalorder %v215, 1
        %v217 = vsel %vm216, %v196, 0.0
        %v218 = vsel %vm216, %v197, 0.0
        %v219 = vsel %vm216, %v198, 0.0
        %v220 = vsel %vm216, %v199, 0.0
        %v221 = vsel %vm216, %v200, 0.0
        %v222 = vsel %vm216, %v201, 0.0
        %v223 = vsel %vm216, %v202, 0.0
        %v224 = vsel %vm216, %v203, 0.0
        %v225 = vsel %vm216, %v204, 0.0
        %v226 = vsel %vm216, %v205, 0.0
        %v227 = vsel %vm216, %v206, 0.0
        %v228 = vsel %vm216, %v207, 0.0
        %v229 = vsel %vm216, %v208, 0.0
        %v230 = vsel %vm216, %v209, 0.0
        %v231 = vsel %vm216, %v210, 0.0
        %v232 = vsel %vm216, %v211, 0.0
        %233 = vadd.xlane.f32.xlu0 %v217
        %v234 = vpop.xlane.xlu0 %233
        %235 = vadd.xlane.f32.xlu0 %v218
        %v236 = vpop.xlane.xlu0 %235
        %237 = vadd.xlane.f32.xlu0 %v219
        %v238 = vpop.xlane.xlu0 %237
        %239 = vadd.xlane.f32.xlu0 %v220
        %v240 = vpop.xlane.xlu0 %239
        %241 = vadd.xlane.f32.xlu0 %v221
        %v242 = vpop.xlane.xlu0 %241
        %243 = vadd.xlane.f32.xlu0 %v222
        %v244 = vpop.xlane.xlu0 %243
        %245 = vadd.xlane.f32.xlu0 %v223
        %v246 = vpop.xlane.xlu0 %245
        %247 = vadd.xlane.f32.xlu0 %v224
        %v248 = vpop.xlane.xlu0 %247
        %249 = vadd.xlane.f32.xlu0 %v225
        %v250 = vpop.xlane.xlu0 %249
        %251 = vadd.xlane.f32.xlu0 %v226
        %v252 = vpop.xlane.xlu0 %251
        %253 = vadd.xlane.f32.xlu0 %v227
        %v254 = vpop.xlane.xlu0 %253
        %255 = vadd.xlane.f32.xlu0 %v228
        %v256 = vpop.xlane.xlu0 %255
        %257 = vadd.xlane.f32.xlu0 %v229
        %v258 = vpop.xlane.xlu0 %257
        %259 = vadd.xlane.f32.xlu0 %v230
        %v260 = vpop.xlane.xlu0 %259
        %261 = vadd.xlane.f32.xlu0 %v231
        %v262 = vpop.xlane.xlu0 %261
        %263 = vadd.xlane.f32.xlu0 %v232
        %v264 = vpop.xlane.xlu0 %263
        %v265 = vadd.f32 %v234, 0.0
        %v266 = vadd.f32 %v236, 0.0
        %v267 = vadd.f32 %v238, 0.0
        %v268 = vadd.f32 %v240, 0.0
        %v269 = vadd.f32 %v242, 0.0
        %v270 = vadd.f32 %v244, 0.0
        %v271 = vadd.f32 %v246, 0.0
        %v272 = vadd.f32 %v248, 0.0
        %v273 = vadd.f32 %v250, 0.0
        %v274 = vadd.f32 %v252, 0.0
        %v275 = vadd.f32 %v254, 0.0
        %v276 = vadd.f32 %v256, 0.0
        %v277 = vadd.f32 %v258, 0.0
        %v278 = vadd.f32 %v260, 0.0
        %v279 = vadd.f32 %v262, 0.0
        %v280 = vadd.f32 %v264, 0.0
        %v281 = vsel %vm216, 0.0, %v196
        %v282 = vsel %vm216, 0.0, %v197
        %v283 = vsel %vm216, 0.0, %v198
        %v284 = vsel %vm216, 0.0, %v199
        %v285 = vsel %vm216, 0.0, %v200
        %v286 = vsel %vm216, 0.0, %v201
        %v287 = vsel %vm216, 0.0, %v202
        %v288 = vsel %vm216, 0.0, %v203
        %v289 = vsel %vm216, 0.0, %v204
        %v290 = vsel %vm216, 0.0, %v205
        %v291 = vsel %vm216, 0.0, %v206
        %v292 = vsel %vm216, 0.0, %v207
        %v293 = vsel %vm216, 0.0, %v208
        %v294 = vsel %vm216, 0.0, %v209
        %v295 = vsel %vm216, 0.0, %v210
        %v296 = vsel %vm216, 0.0, %v211
        %297 = vadd.xlane.f32.xlu0 %v281
        %v298 = vpop.xlane.xlu0 %297
        %299 = vadd.xlane.f32.xlu0 %v282
        %v300 = vpop.xlane.xlu0 %299
        %301 = vadd.xlane.f32.xlu0 %v283
        %v302 = vpop.xlane.xlu0 %301
        %303 = vadd.xlane.f32.xlu0 %v284
        %v304 = vpop.xlane.xlu0 %303
        %305 = vadd.xlane.f32.xlu0 %v285
        %v306 = vpop.xlane.xlu0 %305
        %307 = vadd.xlane.f32.xlu0 %v286
        %v308 = vpop.xlane.xlu0 %307
        %309 = vadd.xlane.f32.xlu0 %v287
        %v310 = vpop.xlane.xlu0 %309
        %311 = vadd.xlane.f32.xlu0 %v288
        %v312 = vpop.xlane.xlu0 %311
        %313 = vadd.xlane.f32.xlu0 %v289
        %v314 = vpop.xlane.xlu0 %313
        %315 = vadd.xlane.f32.xlu0 %v290
        %v316 = vpop.xlane.xlu0 %315
        %317 = vadd.xlane.f32.xlu0 %v291
        %v318 = vpop.xlane.xlu0 %317
        %319 = vadd.xlane.f32.xlu0 %v292
        %v320 = vpop.xlane.xlu0 %319
        %321 = vadd.xlane.f32.xlu0 %v293
        %v322 = vpop.xlane.xlu0 %321
        %323 = vadd.xlane.f32.xlu0 %v294
        %v324 = vpop.xlane.xlu0 %323
        %325 = vadd.xlane.f32.xlu0 %v295
        %v326 = vpop.xlane.xlu0 %325
        %327 = vadd.xlane.f32.xlu0 %v296
        %v328 = vpop.xlane.xlu0 %327
        %v329 = vadd.f32 %v298, 0.0
        %v330 = vadd.f32 %v300, 0.0
        %v331 = vadd.f32 %v302, 0.0
        %v332 = vadd.f32 %v304, 0.0
        %v333 = vadd.f32 %v306, 0.0
        %v334 = vadd.f32 %v308, 0.0
        %v335 = vadd.f32 %v310, 0.0
        %v336 = vadd.f32 %v312, 0.0
        %v337 = vadd.f32 %v314, 0.0
        %v338 = vadd.f32 %v316, 0.0
        %v339 = vadd.f32 %v318, 0.0
        %v340 = vadd.f32 %v320, 0.0
        %v341 = vadd.f32 %v322, 0.0
        %v342 = vadd.f32 %v324, 0.0
        %v343 = vadd.f32 %v326, 0.0
        %v344 = vadd.f32 %v328, 0.0
        %s345 = scalar_lea.vmem %s168, 8 [#allocation2]
        %v346 = vld [vmem:[%s345] sm:$0xff]
        %v347 = vld [vmem:[%s345 + $0x10] sm:$0xff]
        %v348 = vld [vmem:[%s345 + $0x20] sm:$0xff]
        %v349 = vld [vmem:[%s345 + $0x30] sm:$0xff]
        %v350 = vld [vmem:[%s345 + $0x40] sm:$0xff]
        %v351 = vld [vmem:[%s345 + $0x50] sm:$0xff]
        %v352 = vld [vmem:[%s345 + $0x60] sm:$0xff]
        %v353 = vld [vmem:[%s345 + $0x70] sm:$0xff]
        %v354 = vld [vmem:[%s345 + $0x80] sm:$0xff]
        %v355 = vld [vmem:[%s345 + $0x90] sm:$0xff]
        %v356 = vld [vmem:[%s345 + $0xa0] sm:$0xff]
        %v357 = vld [vmem:[%s345 + $0xb0] sm:$0xff]
        %v358 = vld [vmem:[%s345 + $0xc0] sm:$0xff]
        %v359 = vld [vmem:[%s345 + $0xd0] sm:$0xff]
        %v360 = vld [vmem:[%s345 + $0xe0] sm:$0xff]
        %v361 = vld [vmem:[%s345 + $0xf0] sm:$0xff]
        %s362 = ssub.s32 128, 128
        %v363 = vstv %s362
        %vm364 = vcmp.lt.s32.totalorder %v195, %v363
        %v365 = vsel %vm364, 1, 0
        %vm366 = vcmp.eq.s32.totalorder %v365, 1
        %v367 = vsel %vm366, %v346, 0.0
        %v368 = vsel %vm366, %v347, 0.0
        %v369 = vsel %vm366, %v348, 0.0
        %v370 = vsel %vm366, %v349, 0.0
        %v371 = vsel %vm366, %v350, 0.0
        %v372 = vsel %vm366, %v351, 0.0
        %v373 = vsel %vm366, %v352, 0.0
        %v374 = vsel %vm366, %v353, 0.0
        %v375 = vsel %vm366, %v354, 0.0
        %v376 = vsel %vm366, %v355, 0.0
        %v377 = vsel %vm366, %v356, 0.0
        %v378 = vsel %vm366, %v357, 0.0
        %v379 = vsel %vm366, %v358, 0.0
        %v380 = vsel %vm366, %v359, 0.0
        %v381 = vsel %vm366, %v360, 0.0
        %v382 = vsel %vm366, %v361, 0.0
        %383 = vadd.xlane.f32.xlu0 %v367
        %v384 = vpop.xlane.xlu0 %383
        %385 = vadd.xlane.f32.xlu0 %v368
        %v386 = vpop.xlane.xlu0 %385
        %387 = vadd.xlane.f32.xlu0 %v369
        %v388 = vpop.xlane.xlu0 %387
        %389 = vadd.xlane.f32.xlu0 %v370
        %v390 = vpop.xlane.xlu0 %389
        %391 = vadd.xlane.f32.xlu0 %v371
        %v392 = vpop.xlane.xlu0 %391
        %393 = vadd.xlane.f32.xlu0 %v372
        %v394 = vpop.xlane.xlu0 %393
        %395 = vadd.xlane.f32.xlu0 %v373
        %v396 = vpop.xlane.xlu0 %395
        %397 = vadd.xlane.f32.xlu0 %v374
        %v398 = vpop.xlane.xlu0 %397
        %399 = vadd.xlane.f32.xlu0 %v375
        %v400 = vpop.xlane.xlu0 %399
        %401 = vadd.xlane.f32.xlu0 %v376
        %v402 = vpop.xlane.xlu0 %401
        %403 = vadd.xlane.f32.xlu0 %v377
        %v404 = vpop.xlane.xlu0 %403
        %405 = vadd.xlane.f32.xlu0 %v378
        %v406 = vpop.xlane.xlu0 %405
        %407 = vadd.xlane.f32.xlu0 %v379
        %v408 = vpop.xlane.xlu0 %407
        %409 = vadd.xlane.f32.xlu0 %v380
        %v410 = vpop.xlane.xlu0 %409
        %411 = vadd.xlane.f32.xlu0 %v381
        %v412 = vpop.xlane.xlu0 %411
        %413 = vadd.xlane.f32.xlu0 %v382
        %v414 = vpop.xlane.xlu0 %413
        %v415 = vadd.f32 %v265, %v384
        %v416 = vadd.f32 %v266, %v386
        %v417 = vadd.f32 %v267, %v388
        %v418 = vadd.f32 %v268, %v390
        %v419 = vadd.f32 %v269, %v392
        %v420 = vadd.f32 %v270, %v394
        %v421 = vadd.f32 %v271, %v396
        %v422 = vadd.f32 %v272, %v398
        %v423 = vadd.f32 %v273, %v400
        %v424 = vadd.f32 %v274, %v402
        %v425 = vadd.f32 %v275, %v404
        %v426 = vadd.f32 %v276, %v406
        %v427 = vadd.f32 %v277, %v408
        %v428 = vadd.f32 %v278, %v410
        %v429 = vadd.f32 %v279, %v412
        %v430 = vadd.f32 %v280, %v414
        %v431 = vsel %vm366, 0.0, %v346
        %v432 = vsel %vm366, 0.0, %v347
        %v433 = vsel %vm366, 0.0, %v348
        %v434 = vsel %vm366, 0.0, %v349
        %v435 = vsel %vm366, 0.0, %v350
        %v436 = vsel %vm366, 0.0, %v351
        %v437 = vsel %vm366, 0.0, %v352
        %v438 = vsel %vm366, 0.0, %v353
        %v439 = vsel %vm366, 0.0, %v354
        %v440 = vsel %vm366, 0.0, %v355
        %v441 = vsel %vm366, 0.0, %v356
        %v442 = vsel %vm366, 0.0, %v357
        %v443 = vsel %vm366, 0.0, %v358
        %v444 = vsel %vm366, 0.0, %v359
        %v445 = vsel %vm366, 0.0, %v360
        %v446 = vsel %vm366, 0.0, %v361
        %447 = vadd.xlane.f32.xlu0 %v431
        %v448 = vpop.xlane.xlu0 %447
        %449 = vadd.xlane.f32.xlu0 %v432
        %v450 = vpop.xlane.xlu0 %449
        %451 = vadd.xlane.f32.xlu0 %v433
        %v452 = vpop.xlane.xlu0 %451
        %453 = vadd.xlane.f32.xlu0 %v434
        %v454 = vpop.xlane.xlu0 %453
        %455 = vadd.xlane.f32.xlu0 %v435
        %v456 = vpop.xlane.xlu0 %455
        %457 = vadd.xlane.f32.xlu0 %v436
        %v458 = vpop.xlane.xlu0 %457
        %459 = vadd.xlane.f32.xlu0 %v437
        %v460 = vpop.xlane.xlu0 %459
        %461 = vadd.xlane.f32.xlu0 %v438
        %v462 = vpop.xlane.xlu0 %461
        %463 = vadd.xlane.f32.xlu0 %v439
        %v464 = vpop.xlane.xlu0 %463
        %465 = vadd.xlane.f32.xlu0 %v440
        %v466 = vpop.xlane.xlu0 %465
        %467 = vadd.xlane.f32.xlu0 %v441
        %v468 = vpop.xlane.xlu0 %467
        %469 = vadd.xlane.f32.xlu0 %v442
        %v470 = vpop.xlane.xlu0 %469
        %471 = vadd.xlane.f32.xlu0 %v443
        %v472 = vpop.xlane.xlu0 %471
        %473 = vadd.xlane.f32.xlu0 %v444
        %v474 = vpop.xlane.xlu0 %473
        %475 = vadd.xlane.f32.xlu0 %v445
        %v476 = vpop.xlane.xlu0 %475
        %477 = vadd.xlane.f32.xlu0 %v446
        %v478 = vpop.xlane.xlu0 %477
        %v479 = vadd.f32 %v329, %v448
        %v480 = vadd.f32 %v330, %v450
        %v481 = vadd.f32 %v331, %v452
        %v482 = vadd.f32 %v332, %v454
        %v483 = vadd.f32 %v333, %v456
        %v484 = vadd.f32 %v334, %v458
        %v485 = vadd.f32 %v335, %v460
        %v486 = vadd.f32 %v336, %v462
        %v487 = vadd.f32 %v337, %v464
        %v488 = vadd.f32 %v338, %v466
        %v489 = vadd.f32 %v339, %v468
        %v490 = vadd.f32 %v340, %v470
        %v491 = vadd.f32 %v341, %v472
        %v492 = vadd.f32 %v342, %v474
        %v493 = vadd.f32 %v343, %v476
        %v494 = vadd.f32 %v344, %v478
        %v495 = vmul.f32 %v415, 0.0078125
        %v496 = vmul.f32 %v416, 0.0078125
        %v497 = vmul.f32 %v417, 0.0078125
        %v498 = vmul.f32 %v418, 0.0078125
        %v499 = vmul.f32 %v419, 0.0078125
        %v500 = vmul.f32 %v420, 0.0078125
        %v501 = vmul.f32 %v421, 0.0078125
        %v502 = vmul.f32 %v422, 0.0078125
        %v503 = vmul.f32 %v423, 0.0078125
        %v504 = vmul.f32 %v424, 0.0078125
        %v505 = vmul.f32 %v425, 0.0078125
        %v506 = vmul.f32 %v426, 0.0078125
        %v507 = vmul.f32 %v427, 0.0078125
        %v508 = vmul.f32 %v428, 0.0078125
        %v509 = vmul.f32 %v429, 0.0078125
        %v510 = vmul.f32 %v430, 0.0078125
        %v511 = vmul.f32 %v479, 0.0078125
        %v512 = vmul.f32 %v480, 0.0078125
        %v513 = vmul.f32 %v481, 0.0078125
        %v514 = vmul.f32 %v482, 0.0078125
        %v515 = vmul.f32 %v483, 0.0078125
        %v516 = vmul.f32 %v484, 0.0078125
        %v517 = vmul.f32 %v485, 0.0078125
        %v518 = vmul.f32 %v486, 0.0078125
        %v519 = vmul.f32 %v487, 0.0078125
        %v520 = vmul.f32 %v488, 0.0078125
        %v521 = vmul.f32 %v489, 0.0078125
        %v522 = vmul.f32 %v490, 0.0078125
        %v523 = vmul.f32 %v491, 0.0078125
        %v524 = vmul.f32 %v492, 0.0078125
        %v525 = vmul.f32 %v493, 0.0078125
        %v526 = vmul.f32 %v494, 0.0078125
        %v527 = vadd.f32 %v495, %v511
        %v528 = vadd.f32 %v496, %v512
        %v529 = vadd.f32 %v497, %v513
        %v530 = vadd.f32 %v498, %v514
        %v531 = vadd.f32 %v499, %v515
        %v532 = vadd.f32 %v500, %v516
        %v533 = vadd.f32 %v501, %v517
        %v534 = vadd.f32 %v502, %v518
        %v535 = vadd.f32 %v503, %v519
        %v536 = vadd.f32 %v504, %v520
        %v537 = vadd.f32 %v505, %v521
        %v538 = vadd.f32 %v506, %v522
        %v539 = vadd.f32 %v507, %v523
        %v540 = vadd.f32 %v508, %v524
        %v541 = vadd.f32 %v509, %v525
        %v542 = vadd.f32 %v510, %v526
        %v543 = vadd.f32 %v415, %v479
        %v544 = vadd.f32 %v416, %v480
        %v545 = vadd.f32 %v417, %v481
        %v546 = vadd.f32 %v418, %v482
        %v547 = vadd.f32 %v419, %v483
        %v548 = vadd.f32 %v420, %v484
        %v549 = vadd.f32 %v421, %v485
        %v550 = vadd.f32 %v422, %v486
        %v551 = vadd.f32 %v423, %v487
        %v552 = vadd.f32 %v424, %v488
        %v553 = vadd.f32 %v425, %v489
        %v554 = vadd.f32 %v426, %v490
        %v555 = vadd.f32 %v427, %v491
        %v556 = vadd.f32 %v428, %v492
        %v557 = vadd.f32 %v429, %v493
        %v558 = vadd.f32 %v430, %v494
        %v559 = vmul.f32 %v543, 0.00390625
        %v560 = vmul.f32 %v544, 0.00390625
        %v561 = vmul.f32 %v545, 0.00390625
        %v562 = vmul.f32 %v546, 0.00390625
        %v563 = vmul.f32 %v547, 0.00390625
        %v564 = vmul.f32 %v548, 0.00390625
        %v565 = vmul.f32 %v549, 0.00390625
        %v566 = vmul.f32 %v550, 0.00390625
        %v567 = vmul.f32 %v551, 0.00390625
        %v568 = vmul.f32 %v552, 0.00390625
        %v569 = vmul.f32 %v553, 0.00390625
        %v570 = vmul.f32 %v554, 0.00390625
        %v571 = vmul.f32 %v555, 0.00390625
        %v572 = vmul.f32 %v556, 0.00390625
        %v573 = vmul.f32 %v557, 0.00390625
        %v574 = vmul.f32 %v558, 0.00390625
        %v575 = vadd.f32 %v527, %v559
        %v576 = vadd.f32 %v528, %v560
        %v577 = vadd.f32 %v529, %v561
        %v578 = vadd.f32 %v530, %v562
        %v579 = vadd.f32 %v531, %v563
        %v580 = vadd.f32 %v532, %v564
        %v581 = vadd.f32 %v533, %v565
        %v582 = vadd.f32 %v534, %v566
        %v583 = vadd.f32 %v535, %v567
        %v584 = vadd.f32 %v536, %v568
        %v585 = vadd.f32 %v537, %v569
        %v586 = vadd.f32 %v538, %v570
        %v587 = vadd.f32 %v539, %v571
        %v588 = vadd.f32 %v540, %v572
        %v589 = vadd.f32 %v541, %v573
        %v590 = vadd.f32 %v542, %v574
        %v591 = vld [vmem:[%s1] sm:$0xff]
        %v592 = vld [vmem:[%s1 + $0x8] sm:$0xff]
        %v593 = vld [vmem:[%s1 + $0x10] sm:$0xff]
        %v594 = vld [vmem:[%s1 + $0x18] sm:$0xff]
        %v595 = vld [vmem:[%s1 + $0x20] sm:$0xff]
        %v596 = vld [vmem:[%s1 + $0x28] sm:$0xff]
        %v597 = vld [vmem:[%s1 + $0x30] sm:$0xff]
        %v598 = vld [vmem:[%s1 + $0x38] sm:$0xff]
        %v615 = vperm.slane %v575, %v195
        %v616 = vadd.s32 %v195, 4294967288
        %v617 = vperm.slane %v576, %v616
        %vm618 = vcmask 130112
        %v619 = vsel %vm618, %v617, %v615
        %v620 = vadd.s32 %v195, 4294967280
        %v621 = vperm.slane %v577, %v620
        %vm622 = vcmask 195712
        %v623 = vsel %vm622, %v621, %v619
        %v624 = vadd.s32 %v195, 4294967272
        %v625 = vperm.slane %v578, %v624
        %vm626 = vcmask 261312
        %v627 = vsel %vm626, %v625, %v623
        %v628 = vadd.s32 %v195, 4294967264
        %v629 = vperm.slane %v579, %v628
        %vm630 = vcmask 326912
        %v631 = vsel %vm630, %v629, %v627
        %v632 = vadd.s32 %v195, 4294967256
        %v633 = vperm.slane %v580, %v632
        %vm634 = vcmask 392512
        %v635 = vsel %vm634, %v633, %v631
        %v636 = vadd.s32 %v195, 4294967248
        %v637 = vperm.slane %v581, %v636
        %vm638 = vcmask 458112
        %v639 = vsel %vm638, %v637, %v635
        %v640 = vadd.s32 %v195, 4294967240
        %v641 = vperm.slane %v582, %v640
        %vm642 = vcmask 523712
        %v643 = vsel %vm642, %v641, %v639
        %v644 = vperm.slane %v583, %v195
        %v645 = vperm.slane %v584, %v616
        %v646 = vsel %vm618, %v645, %v644
        %v647 = vperm.slane %v585, %v620
        %v648 = vsel %vm622, %v647, %v646
        %v649 = vperm.slane %v586, %v624
        %v650 = vsel %vm626, %v649, %v648
        %v651 = vperm.slane %v587, %v628
        %v652 = vsel %vm630, %v651, %v650
        %v653 = vperm.slane %v588, %v632
        %v654 = vsel %vm634, %v653, %v652
        %v655 = vperm.slane %v589, %v636
        %v656 = vsel %vm638, %v655, %v654
        %v657 = vperm.slane %v590, %v640
        %v658 = vsel %vm642, %v657, %v656
        %vm659 = vcmask 1041409
        %v660 = vsel %vm659, %v658, %v643
        %vm661 = vcmask 523264
        %v662 = vsel %vm661, %v660, 0
        %664 = vmatpush.msra.mxu0 0.0
        %665 = vmatpush.msra.mxu0 0.0
        %666 = vmatpush.msra.mxu0 0.0
        %667 = vmatpush.msra.mxu0 0.0
        %668 = vmatpush.msra.mxu0 0.0
        %669 = vmatpush.msra.mxu0 0.0
        %670 = vmatpush.msra.mxu0 0.0
        %671 = vmatpush.msra.mxu0 0.0
        %672 = vmatpush.msra.mxu0 %v598
        %673 = vmatpush.msra.mxu0 %v597
        %674 = vmatpush.msra.mxu0 %v596
        %675 = vmatpush.msra.mxu0 %v595
        %676 = vmatpush.msra.mxu0 %v594
        %677 = vmatpush.msra.mxu0 %v593
        %678 = vmatpush.msra.mxu0 %v592
        %679 = vmatpush.msra.mxu0 %v591
        %680 = vmatmul.f32.gmra.mxu0 %v662
        %v681 = vpop.f32.mrf.mxu0
        %v682 = vadd.f32 0.0, %v681
        %683 = vdwg.mxu0
        %v684 = vmax.f32 %v682, 0.0
        %v685 = vld [vmem:[%s2] sm:$0xf]
        %vm686 = vcmask 31744
        %v688 = vsel %vm686, %v684, 0
        %vm690 = vcmask 1043456
        %v692 = vsel %vm690, %v685, 0
        %694 = vmatpush.msra.mxu0 0.0
        %695 = vmatpush.msra.mxu0 0.0
        %696 = vmatpush.msra.mxu0 0.0
        %697 = vmatpush.msra.mxu0 0.0
        %698 = vmatpush.msra.mxu0 0.0
        %699 = vmatpush.msra.mxu0 0.0
        %700 = vmatpush.msra.mxu0 0.0
        %701 = vmatpush.msra.mxu0 0.0
        %702 = vmatpush.msra.mxu0 0.0
        %703 = vmatpush.msra.mxu0 0.0
        %704 = vmatpush.msra.mxu0 0.0
        %705 = vmatpush.msra.mxu0 0.0
        %706 = vmatpush.msra.mxu0 0.0
        %707 = vmatpush.msra.mxu0 0.0
        %708 = vmatpush.msra.mxu0 0.0
        %709 = vmatpush.msra.mxu0 %v692
        %710 = vmatmul.f32.gmra.mxu0 %v688
        %v711 = vpop.f32.mrf.mxu0
        %v712 = vadd.f32 0.0, %v711
        %713 = vdwg.mxu0
        %v714 = vxor.u32 %v712, 2147483648
        %v715 = vmul.f32 %v714, 1.442695
        %v716 = vpow.pop %v715
        %v717 = vadd.f32 %v716, 1.0
        %v718 = vrcp.pop %v717
        %v719 = vmul.f32 %v717, %v718
        %v720 = vsub.f32 1.0, %v719
        %v721 = vmul.f32 %v718, %v720
        %v722 = vadd.f32 %v718, %v721
        %vm723 = vweird.f32 %v717
        %vm724 = vweird.f32 %v718
        %vm725 = vmor %vm723, %vm724
        %v726 = vsel %vm725, %v718, %v722
        %v727 = vand.u32 2147483647, %v717
        %vm728 = vcmp.eq.f32.partialorder %v727, 8.507059e+37
        %v729 = vand.u32 %v717, 2147483648
        %v730 = vor.u32 1.1754944e-38, %v729
        %v731 = vsel %vm728, %v730, %v726
        %v732 = vmul.f32 1.0, %v731
        %v733 = vperm.slane %v732, 0
        %v734 = vlaneseq
        %v735 = vshrl.u32 %v734, 7
        %737 = vset.pattern.permute.xlu0 %v735
        %738 = vperm.xlu0 %737, %v733
        %v739 = vpop.permute.xlu0 %738
        %v740 = vlaneseq
        %v741 = vshrl.u32 %v740, 7
        %v742 = vadd.s32 %v741, 8
        %743 = vset.pattern.permute.xlu0 %v742
        %744 = vperm.xlu0 %743, %v733
        %v745 = vpop.permute.xlu0 %744
        %v746 = vlaneseq
        %v747 = vshrl.u32 %v746, 7
        %v748 = vadd.s32 %v747, 16
        %749 = vset.pattern.permute.xlu0 %v748
        %750 = vperm.xlu0 %749, %v733
        %v751 = vpop.permute.xlu0 %750
        %v752 = vlaneseq
        %v753 = vshrl.u32 %v752, 7
        %v754 = vadd.s32 %v753, 24
        %755 = vset.pattern.permute.xlu0 %v754
        %756 = vperm.xlu0 %755, %v733
        %v757 = vpop.permute.xlu0 %756
        %v758 = vlaneseq
        %v759 = vshrl.u32 %v758, 7
        %v760 = vadd.s32 %v759, 32
        %761 = vset.pattern.permute.xlu0 %v760
        %762 = vperm.xlu0 %761, %v733
        %v763 = vpop.permute.xlu0 %762
        %v764 = vlaneseq
        %v765 = vshrl.u32 %v764, 7
        %v766 = vadd.s32 %v765, 40
        %767 = vset.pattern.permute.xlu0 %v766
        %768 = vperm.xlu0 %767, %v733
        %v769 = vpop.permute.xlu0 %768
        %v770 = vlaneseq
        %v771 = vshrl.u32 %v770, 7
        %v772 = vadd.s32 %v771, 48
        %773 = vset.pattern.permute.xlu0 %v772
        %774 = vperm.xlu0 %773, %v733
        %v775 = vpop.permute.xlu0 %774
        %v776 = vlaneseq
        %v777 = vshrl.u32 %v776, 7
        %v778 = vadd.s32 %v777, 56
        %779 = vset.pattern.permute.xlu0 %v778
        %780 = vperm.xlu0 %779, %v733
        %v781 = vpop.permute.xlu0 %780
        %v782 = vperm.slane %v732, 1
        %v783 = vlaneseq
        %v784 = vshrl.u32 %v783, 7
        %786 = vset.pattern.permute.xlu0 %v784
        %787 = vperm.xlu0 %786, %v782
        %v788 = vpop.permute.xlu0 %787
        %v789 = vlaneseq
        %v790 = vshrl.u32 %v789, 7
        %v791 = vadd.s32 %v790, 8
        %792 = vset.pattern.permute.xlu0 %v791
        %793 = vperm.xlu0 %792, %v782
        %v794 = vpop.permute.xlu0 %793
        %v795 = vlaneseq
        %v796 = vshrl.u32 %v795, 7
        %v797 = vadd.s32 %v796, 16
        %798 = vset.pattern.permute.xlu0 %v797
        %799 = vperm.xlu0 %798, %v782
        %v800 = vpop.permute.xlu0 %799
        %v801 = vlaneseq
        %v802 = vshrl.u32 %v801, 7
        %v803 = vadd.s32 %v802, 24
        %804 = vset.pattern.permute.xlu0 %v803
        %805 = vperm.xlu0 %804, %v782
        %v806 = vpop.permute.xlu0 %805
        %v807 = vlaneseq
        %v808 = vshrl.u32 %v807, 7
        %v809 = vadd.s32 %v808, 32
        %810 = vset.pattern.permute.xlu0 %v809
        %811 = vperm.xlu0 %810, %v782
        %v812 = vpop.permute.xlu0 %811
        %v813 = vlaneseq
        %v814 = vshrl.u32 %v813, 7
        %v815 = vadd.s32 %v814, 40
        %816 = vset.pattern.permute.xlu0 %v815
        %817 = vperm.xlu0 %816, %v782
        %v818 = vpop.permute.xlu0 %817
        %v819 = vlaneseq
        %v820 = vshrl.u32 %v819, 7
        %v821 = vadd.s32 %v820, 48
        %822 = vset.pattern.permute.xlu0 %v821
        %823 = vperm.xlu0 %822, %v782
        %v824 = vpop.permute.xlu0 %823
        %v825 = vlaneseq
        %v826 = vshrl.u32 %v825, 7
        %v827 = vadd.s32 %v826, 56
        %828 = vset.pattern.permute.xlu0 %v827
        %829 = vperm.xlu0 %828, %v782
        %v830 = vpop.permute.xlu0 %829
        %v831 = vmul.f32 %v196, %v739
        %v832 = vmul.f32 %v197, %v745
        %v833 = vmul.f32 %v198, %v751
        %v834 = vmul.f32 %v199, %v757
        %v835 = vmul.f32 %v200, %v763
        %v836 = vmul.f32 %v201, %v769
        %v837 = vmul.f32 %v202, %v775
        %v838 = vmul.f32 %v203, %v781
        %v839 = vmul.f32 %v204, %v788
        %v840 = vmul.f32 %v205, %v794
        %v841 = vmul.f32 %v206, %v800
        %v842 = vmul.f32 %v207, %v806
        %v843 = vmul.f32 %v208, %v812
        %v844 = vmul.f32 %v209, %v818
        %v845 = vmul.f32 %v210, %v824
        %v846 = vmul.f32 %v211, %v830
        %847 = vst [vmem:[%s191] sm:$0xff] %v831
        %848 = vst [vmem:[%s191 + $0x10] sm:$0xff] %v832
        %849 = vst [vmem:[%s191 + $0x20] sm:$0xff] %v833
        %850 = vst [vmem:[%s191 + $0x30] sm:$0xff] %v834
        %851 = vst [vmem:[%s191 + $0x40] sm:$0xff] %v835
        %852 = vst [vmem:[%s191 + $0x50] sm:$0xff] %v836
        %853 = vst [vmem:[%s191 + $0x60] sm:$0xff] %v837
        %854 = vst [vmem:[%s191 + $0x70] sm:$0xff] %v838
        %855 = vst [vmem:[%s191 + $0x80] sm:$0xff] %v839
        %856 = vst [vmem:[%s191 + $0x90] sm:$0xff] %v840
        %857 = vst [vmem:[%s191 + $0xa0] sm:$0xff] %v841
        %858 = vst [vmem:[%s191 + $0xb0] sm:$0xff] %v842
        %859 = vst [vmem:[%s191 + $0xc0] sm:$0xff] %v843
        %860 = vst [vmem:[%s191 + $0xd0] sm:$0xff] %v844
        %861 = vst [vmem:[%s191 + $0xe0] sm:$0xff] %v845
        %862 = vst [vmem:[%s191 + $0xf0] sm:$0xff] %v846
        %v863 = vld [vmem:[%s345] sm:$0xff]
        %v864 = vld [vmem:[%s345 + $0x10] sm:$0xff]
        %v865 = vld [vmem:[%s345 + $0x20] sm:$0xff]
        %v866 = vld [vmem:[%s345 + $0x30] sm:$0xff]
        %v867 = vld [vmem:[%s345 + $0x40] sm:$0xff]
        %v868 = vld [vmem:[%s345 + $0x50] sm:$0xff]
        %v869 = vld [vmem:[%s345 + $0x60] sm:$0xff]
        %v870 = vld [vmem:[%s345 + $0x70] sm:$0xff]
        %v871 = vld [vmem:[%s345 + $0x80] sm:$0xff]
        %v872 = vld [vmem:[%s345 + $0x90] sm:$0xff]
        %v873 = vld [vmem:[%s345 + $0xa0] sm:$0xff]
        %v874 = vld [vmem:[%s345 + $0xb0] sm:$0xff]
        %v875 = vld [vmem:[%s345 + $0xc0] sm:$0xff]
        %v876 = vld [vmem:[%s345 + $0xd0] sm:$0xff]
        %v877 = vld [vmem:[%s345 + $0xe0] sm:$0xff]
        %v878 = vld [vmem:[%s345 + $0xf0] sm:$0xff]
        %v879 = vmul.f32 %v863, %v739
        %v880 = vmul.f32 %v864, %v745
        %v881 = vmul.f32 %v865, %v751
        %v882 = vmul.f32 %v866, %v757
        %v883 = vmul.f32 %v867, %v763
        %v884 = vmul.f32 %v868, %v769
        %v885 = vmul.f32 %v869, %v775
        %v886 = vmul.f32 %v870, %v781
        %v887 = vmul.f32 %v871, %v788
        %v888 = vmul.f32 %v872, %v794
        %v889 = vmul.f32 %v873, %v800
        %v890 = vmul.f32 %v874, %v806
        %v891 = vmul.f32 %v875, %v812
        %v892 = vmul.f32 %v876, %v818
        %v893 = vmul.f32 %v877, %v824
        %v894 = vmul.f32 %v878, %v830
        %s895 = scalar_lea.vmem %s191, 8 [#allocation5]
        %896 = vst [vmem:[%s895] sm:$0xff] %v879
        %897 = vst [vmem:[%s895 + $0x10] sm:$0xff] %v880
        %898 = vst [vmem:[%s895 + $0x20] sm:$0xff] %v881
        %899 = vst [vmem:[%s895 + $0x30] sm:$0xff] %v882
        %900 = vst [vmem:[%s895 + $0x40] sm:$0xff] %v883
        %901 = vst [vmem:[%s895 + $0x50] sm:$0xff] %v884
        %902 = vst [vmem:[%s895 + $0x60] sm:$0xff] %v885
        %903 = vst [vmem:[%s895 + $0x70] sm:$0xff] %v886
        %904 = vst [vmem:[%s895 + $0x80] sm:$0xff] %v887
        %905 = vst [vmem:[%s895 + $0x90] sm:$0xff] %v888
        %906 = vst [vmem:[%s895 + $0xa0] sm:$0xff] %v889
        %907 = vst [vmem:[%s895 + $0xb0] sm:$0xff] %v890
        %908 = vst [vmem:[%s895 + $0xc0] sm:$0xff] %v891
        %909 = vst [vmem:[%s895 + $0xd0] sm:$0xff] %v892
        %910 = vst [vmem:[%s895 + $0xe0] sm:$0xff] %v893
        %911 = vst [vmem:[%s895 + $0xf0] sm:$0xff] %v894
        %s912 = sand.u32 %s96, 1
        %s913 = scalar_lea.sflag [#allocation4], %s912
        %s914 = sand.u32 %s96, 1
        %s915 = smul.addr %s914, 256
        %s916 = scalar_lea.vmem [#allocation5], %s915
        // Predicated region
        $region37: #{tpu_custom_call.1} parent=31 // pred_check
          %p917 = pneg %p106
        $region38: #{tpu_custom_call.1} parent=31 // pred_check_branch
          %919 = sbr.rel (%p917) target = $region40
        $region39: #{tpu_custom_call.1} parent=31 // pred_region
          %s920 = smul.u32 2, %s20
          %922 = vsyncadd %s913, 0
          %s923 = smul.addr %s920, 16
          %s924 = smul.addr %s923, 8
          %s925 = scalar_lea.hbm %s3, %s924
          %s926 = sshll.u32 %s916, 4
          %s927 = int_to_ptr.vmem [resolvable:$true] %s926
          %s928 = sshll.u32 %s925, 4
          %s929 = int_to_ptr.hbm [resolvable:$true] %s928
          %934 = dma.vmem_to_hbm [thread:$0]  %s927, 4096, %s929, %s913, 256, 256, 16
        $region40: #{tpu_custom_call.1} parent=31 // pred_fallthru
          _
      $region32: #{tpu_custom_call.1} parent=5 // pred_fallthru
        _
      %p935 = scmp.le.s32.totalorder 2, %s15
      // Predicated region
      $region41: #{tpu_custom_call.1} parent=5 // pred_check
        %p936 = pneg %p935
      $region42: #{tpu_custom_call.1} parent=5 // pred_check_branch
        %938 = sbr.rel (%p936) target = $region44
      $region43: #{tpu_custom_call.1} parent=5 // pred_region
        %s939 = ssub.s32 %s15, 2
        // Predicated region
        $region45: #{tpu_custom_call.1} parent=43 // pred_check
          %p940 = pneg %p112
        $region46: #{tpu_custom_call.1} parent=43 // pred_check_branch
          %942 = sbr.rel (%p940) target = $region48
        $region47: #{tpu_custom_call.1} parent=43 // pred_region
          %s943 = sand.u32 %s97, 1
          %s944 = scalar_lea.sflag [#allocation4], %s943
          %s945 = sand.u32 %s97, 1
          %s946 = smul.addr %s945, 256
          %s947 = scalar_lea.vmem [#allocation5], %s946
          %949 = dma.done %s944, 4096
        $region48: #{tpu_custom_call.1} parent=43 // pred_fallthru
          _
      $region44: #{tpu_custom_call.1} parent=5 // pred_fallthru
        _
    $region6: #{tpu_custom_call.1} parent=1 // loop_footer
      %s19 = sadd.s32 1, %s15
    $region7: #{tpu_custom_call.1} parent=1 // loop_footer_branch
      %14 = sbr.rel target = $region3
    $region8: #{tpu_custom_call.1} parent=1 // loop_exit
      _
    %950 = vsyncpa [#allocation3], 1
    %s951 = scalar_lea.sflag [#allocation3], 1
    %952 = vsyncpa %s951, 1
    %953 = vsyncpa [#allocation4], 1
    %s954 = scalar_lea.sflag [#allocation4], 1
    %955 = vsyncpa %s954, 1

</llo_original>
